<compile_context>
chip_gen: v5e
topology: v5e:2x2
jax: 0.10.0
libtpu: 0.0.40
codegen_flags: <defaults>
</compile_context>

<pallas_src>
import jax
import jax.numpy as jnp
import numpy as np
from jax.experimental import pallas as pl
from jax.experimental.pallas import tpu as pltpu

# Synthetic hyperparameters (small, consistent with the module's forward).
VOCAB_SIZE = 50
DECODER_DIM = 32
CONTEXT_SIZE = 2
JOINER_DIM = 64
GROUPS = DECODER_DIM // 4          # icefall Decoder: groups = decoder_dim // 4
IN_PER_GROUP = DECODER_DIM // GROUPS
OUT_PER_GROUP = DECODER_DIM // GROUPS

# Padded (lane-dense) sizes.
V_PAD = 64                          # per-context vocab slot; C * V_PAD = 128
D_PAD = 128                         # padded decoder_dim
J_PAD = 128                         # padded joiner_dim
BIAS_COL = DECODER_DIM              # constant-1 channel of h used to fold the proj bias

assert VOCAB_SIZE <= V_PAD
assert DECODER_DIM < D_PAD and JOINER_DIM <= J_PAD
assert (CONTEXT_SIZE * V_PAD) % 128 == 0


def decoder_kernel(y_ref, w1_ref, w2_ref, out_ref):
    # y_ref: (block_n, C) int32 PRE-SHIFTED token ids (id + k*V_PAD for context slot k).
    ys = y_ref[...]
    bn = ys.shape[0]

    # One-hot over the concatenated (C*V_PAD = 128) lane axis: hits for the C context
    # slots land in disjoint lane ranges, so a single OR-then-cast builds the whole row.
    cols = jax.lax.broadcasted_iota(jnp.int32, (bn, CONTEXT_SIZE * V_PAD), 1)
    hit = cols == ys[:, 0:1]
    for k in range(1, CONTEXT_SIZE):
        hit = hit | (cols == ys[:, k:k + 1])
    onehot = hit.astype(jnp.bfloat16)                     # 0/1 exact in bf16

    # Embedding gather + grouped Conv1d (fused into W1): bf16 x bf16 -> f32 accumulate.
    h = jnp.dot(onehot, w1_ref[...], preferred_element_type=jnp.float32)
    h = jnp.maximum(h, 0.0).astype(jnp.bfloat16)          # F.relu, back to bf16 for MXU
    # decoder_proj; bias rides on h[:, BIAS_COL] == 1 through W2[BIAS_COL, :].
    out_ref[...] = jnp.dot(h, w2_ref[...],
                           preferred_element_type=jnp.float32).astype(out_ref.dtype)


def build_conv_matrix(conv_w):
    """Expand grouped Conv1d weight (D_out, D_in/groups, C) into a dense
    (C*D_in, D_out) matrix so that x_flat @ Wc == grouped_conv output,
    with x_flat[n, k*D + d] == embedding(y)[n, k, d]."""
    d_out = jnp.arange(DECODER_DIM)
    g = d_out // OUT_PER_GROUP
    in_idx = g[:, None] * IN_PER_GROUP + jnp.arange(IN_PER_GROUP)[None, :]   # (D, ipg)
    w_full = jnp.zeros((DECODER_DIM, DECODER_DIM, CONTEXT_SIZE), jnp.float32)
    w_full = w_full.at[d_out[:, None], in_idx, :].set(conv_w)                # (D_out, D_in, C)
    # Wc[k*D + d_in, c_out] = w_full[c_out, d_in, k]
    return jnp.transpose(w_full, (2, 1, 0)).reshape(CONTEXT_SIZE * DECODER_DIM, DECODER_DIM)


def prepare_params(emb_table, conv_w, proj_w, proj_b):
    """Fold embedding + grouped conv + proj bias into two padded bf16 matrices.
    Runs ONCE at parameter-load time (hoisted off the forward path); the folding
    itself is done in f32 with HIGHEST precision."""
    wc = build_conv_matrix(conv_w.astype(jnp.float32))          # (C*D, D)
    emb = emb_table.astype(jnp.float32)

    # W1[(k, v), d] = (emb_table @ Wc_k)[v, d]  -- gather + grouped conv fused.
    w1 = jnp.zeros((CONTEXT_SIZE * V_PAD, D_PAD), jnp.float32)
    for k in range(CONTEXT_SIZE):
        fused_k = jnp.dot(emb, wc[k * DECODER_DIM:(k + 1) * DECODER_DIM, :],
                          precision=jax.lax.Precision.HIGHEST)  # (V, D)
        w1 = w1.at[k * V_PAD:k * V_PAD + VOCAB_SIZE, :DECODER_DIM].set(fused_k)
    # Constant-1 channel: every one-hot row has exactly CONTEXT_SIZE ones, so
    # h[:, BIAS_COL] == 1 after matmul #1 (1/C is exact in bf16 for C a power of 2).
    w1 = w1.at[:, BIAS_COL].set(1.0 / CONTEXT_SIZE)

    # W2 = padded proj_w.T with the bias folded into row BIAS_COL.
    w2 = jnp.zeros((D_PAD, J_PAD), jnp.float32)
    w2 = w2.at[:DECODER_DIM, :JOINER_DIM].set(proj_w.T.astype(jnp.float32))
    w2 = w2.at[BIAS_COL, :JOINER_DIM].set(proj_b.astype(jnp.float32))

    # Ship bf16 to the kernel: single-pass MXU everywhere, half the weight DMA.
    return w1.astype(jnp.bfloat16), w2.astype(jnp.bfloat16)


def _pick_block_n(n):
    """>= 2 blocks of >= 128 rows for large batches (engages both v7x TensorCores and
    amortizes MXU fill on v6e); tiny batches stay single-step."""
    for bn in (512, 256, 128):
        if n % bn == 0 and n // bn >= 2:
            return bn
    return n


def onnx_decoder_forward(y, w1, w2, *, block_n=None, return_padded=False):
    n = y.shape[0]
    if block_n is None:
        block_n = _pick_block_n(n)
    assert n % block_n == 0 and block_n % 8 == 0, "pad the batch to a multiple of 8"

    # Pre-shift ids into their per-context lane ranges (removes in-kernel scalar adds).
    shifts = (jnp.arange(CONTEXT_SIZE, dtype=jnp.int32) * V_PAD)[None, :]
    y_shifted = y.astype(jnp.int32) + shifts

    out_pad = pl.pallas_call(
        decoder_kernel,
        out_shape=jax.ShapeDtypeStruct((n, J_PAD), jnp.float32),
        grid_spec=pltpu.PrefetchScalarGridSpec(
            num_scalar_prefetch=0,
            grid=(n // block_n,),
            in_specs=[
                pl.BlockSpec((block_n, CONTEXT_SIZE), lambda i: (i, 0)),
                pl.BlockSpec((CONTEXT_SIZE * V_PAD, D_PAD), lambda i: (0, 0)),
                pl.BlockSpec((D_PAD, J_PAD), lambda i: (0, 0)),
            ],
            out_specs=pl.BlockSpec((block_n, J_PAD), lambda i: (i, 0)),
        ),
        compiler_params=pltpu.CompilerParams(dimension_semantics=("parallel",)),
    )(y_shifted, w1, w2)

    if return_padded:
        # Lane-dense (N, 128) output for a downstream joiner that accepts padding.
        return out_pad
    # Keep this call under the same jit as the consumer so the slice fuses away.
    return out_pad[:, :JOINER_DIM]


def reference_forward(y, emb_table, conv_w, proj_w, proj_b):
    emb = emb_table[y]                                  # (N, C, D)
    x = jnp.transpose(emb, (0, 2, 1))                   # (N, D, C)  NCW
    conv_out = jax.lax.conv_general_dilated(
        x, conv_w, window_strides=(1,), padding="VALID",
        dimension_numbers=("NCW", "OIW", "NCW"),
        feature_group_count=GROUPS)                     # (N, D, 1)
    h = jax.nn.relu(conv_out[:, :, 0])                  # (N, D)
    return h @ proj_w.T + proj_b                        # (N, J)


if __name__ == "__main__":
    key = jax.random.PRNGKey(0)
    k1, k2, k3, k4, k5 = jax.random.split(key, 5)

    N = 16
    y = jax.random.randint(k1, (N, CONTEXT_SIZE), 0, VOCAB_SIZE, dtype=jnp.int32)

    emb_table = jax.random.normal(k2, (VOCAB_SIZE, DECODER_DIM), jnp.float32) * 0.1
    conv_w = jax.random.normal(k3, (DECODER_DIM, IN_PER_GROUP, CONTEXT_SIZE), jnp.float32) * 0.1
    proj_w = jax.random.normal(k4, (JOINER_DIM, DECODER_DIM), jnp.float32) * 0.1
    proj_b = jax.random.normal(k5, (JOINER_DIM,), jnp.float32) * 0.1

    # Parameter prep is done once, off the forward path (weights land as bf16).
    w1, w2 = prepare_params(emb_table, conv_w, proj_w, proj_b)

    # One jit = one dispatch: id shift + pallas_call + output slice.
    fwd = jax.jit(lambda ids: onnx_decoder_forward(ids, w1, w2))

    out = jax.block_until_ready(fwd(y))

    ref = reference_forward(y, emb_table, conv_w, proj_w, proj_b)
    # bf16 operands (f32 accumulation) => match the f32 reference to ~1e-3 abs here.
    np.testing.assert_allclose(np.asarray(out), np.asarray(ref), rtol=5e-2, atol=5e-3)

    assert out.shape == (N, JOINER_DIM)
    print("KERNEL_OK")
</pallas_src>

<mosaic_0001>
module attributes {stable_mosaic.version = 11 : i64} {
  func.func @decoder_kernel(%arg0: i32, %arg1: memref<16x2xi32, #tpu.memory_space<vmem>>, %arg2: memref<128x128xbf16, #tpu.memory_space<vmem>>, %arg3: memref<128x128xbf16, #tpu.memory_space<vmem>>, %arg4: memref<16x128xf32, #tpu.memory_space<vmem>>) attributes {dimension_semantics = [#tpu.dimension_semantics<parallel>], iteration_bounds = array<i64: 1>, scalar_prefetch = 0 : i64, scratch_operands = 0 : i64, tpu.core_type = #tpu.core_type<tc>, window_params = [{transform_indices = @transform_0, window_bounds = array<i64: 16, 2>}, {pipeline_mode = #tpu.pipeline_mode<synchronous>, transform_indices = @transform_1, window_bounds = array<i64: 128, 128>}, {pipeline_mode = #tpu.pipeline_mode<synchronous>, transform_indices = @transform_2, window_bounds = array<i64: 128, 128>}, {transform_indices = @transform_3, window_bounds = array<i64: 16, 128>}]} {
    %c0 = arith.constant 0 : index
    %c0_0 = arith.constant 0 : index
    %0 = vector.load %arg1[%c0, %c0_0] : memref<16x2xi32, #tpu.memory_space<vmem>>, vector<16x2xi32>
    %1 = tpu.iota {dimensions = array<i32: 1>} : vector<16x128xi32>
    %2 = vector.extract_strided_slice %0 {offsets = [0, 0], sizes = [16, 1], strides = [1, 1]} : vector<16x2xi32> to vector<16x1xi32>
    %3 = vector.broadcast %2 : vector<16x1xi32> to vector<16x128xi32>
    %4 = arith.cmpi eq, %1, %3 : vector<16x128xi32>
    %5 = vector.extract_strided_slice %0 {offsets = [0, 1], sizes = [16, 1], strides = [1, 1]} : vector<16x2xi32> to vector<16x1xi32>
    %6 = vector.broadcast %5 : vector<16x1xi32> to vector<16x128xi32>
    %7 = arith.cmpi eq, %1, %6 : vector<16x128xi32>
    %8 = arith.ori %4, %7 : vector<16x128xi1>
    %9 = arith.extui %8 : vector<16x128xi1> to vector<16x128xi32>
    %10 = arith.sitofp %9 : vector<16x128xi32> to vector<16x128xf32>
    %11 = arith.truncf %10 : vector<16x128xf32> to vector<16x128xbf16>
    %c0_1 = arith.constant 0 : index
    %c0_2 = arith.constant 0 : index
    %12 = vector.load %arg2[%c0_1, %c0_2] : memref<128x128xbf16, #tpu.memory_space<vmem>>, vector<128x128xbf16>
    %cst = arith.constant dense<0.000000e+00> : vector<16x128xf32>
    %13 = tpu.matmul %11, %12, %cst {dimension_numbers = #tpu.dot_dimension_numbers<[1], [0], [0], [1], [0, 0, 1, 1], [], []>} : vector<16x128xbf16>, vector<128x128xbf16>, vector<16x128xf32> -> vector<16x128xf32>
    %cst_3 = arith.constant 0.000000e+00 : f32
    %14 = vector.broadcast %cst_3 : f32 to vector<16x128xf32>
    %15 = arith.maximumf %13, %14 : vector<16x128xf32>
    %16 = arith.truncf %15 : vector<16x128xf32> to vector<16x128xbf16>
    %c0_4 = arith.constant 0 : index
    %c0_5 = arith.constant 0 : index
    %17 = vector.load %arg3[%c0_4, %c0_5] : memref<128x128xbf16, #tpu.memory_space<vmem>>, vector<128x128xbf16>
    %cst_6 = arith.constant dense<0.000000e+00> : vector<16x128xf32>
    %18 = tpu.matmul %16, %17, %cst_6 {dimension_numbers = #tpu.dot_dimension_numbers<[1], [0], [0], [1], [0, 0, 1, 1], [], []>} : vector<16x128xbf16>, vector<128x128xbf16>, vector<16x128xf32> -> vector<16x128xf32>
    %c0_7 = arith.constant 0 : index
    %c0_8 = arith.constant 0 : index
    %19 = vector.load %arg4[%c0_7, %c0_8] : memref<16x128xf32, #tpu.memory_space<vmem>>, vector<16x128xf32>
    tpu.vector_store %arg4[%c0_7, %c0_8], %18 {strides = array<i32>} : memref<16x128xf32, #tpu.memory_space<vmem>>, vector<16x128xf32>,
    return
  }
  func.func @transform_0(%arg0: i32) -> (i32, i32) {
    %c0_i32 = arith.constant 0 : i32
    %c0_i32_0 = arith.constant 0 : i32
    return %arg0, %c0_i32 : i32, i32
  }
  func.func @transform_1(%arg0: i32) -> (i32, i32) {
    %c0_i32 = arith.constant 0 : i32
    %c0_i32_0 = arith.constant 0 : i32
    %c0_i32_1 = arith.constant 0 : i32
    return %c0_i32, %c0_i32_0 : i32, i32
  }
  func.func @transform_2(%arg0: i32) -> (i32, i32) {
    %c0_i32 = arith.constant 0 : i32
    %c0_i32_0 = arith.constant 0 : i32
    %c0_i32_1 = arith.constant 0 : i32
    return %c0_i32, %c0_i32_0 : i32, i32
  }
  func.func @transform_3(%arg0: i32) -> (i32, i32) {
    %c0_i32 = arith.constant 0 : i32
    %c0_i32_0 = arith.constant 0 : i32
    return %arg0, %c0_i32 : i32, i32
  }
}

</mosaic_0001>

<llo_original>
// kernel: _lambda_.1
$region0: #{_lambda_.1}
  #allocation0 [shape = 'u32[]', space=smem, size = 0x4, offset = 0x4, fixed_abs, tag = 'smem constant byte address 0x4 - core index']
  #allocation1 [shape = 'u32[72,128]{1,0:T(1,128)}', space=vmem, size = 0x9000, scoped, tag = 'internal scratch']
  %s0 = inlined_call_operand.vmem [shape: s32[16,2], index: 0, kind: input, shape index: {}]
  %s1 = inlined_call_operand.hbm [shape: bf16[128,128], index: 1, kind: input, shape index: {}]
  %s2 = inlined_call_operand.hbm [shape: bf16[128,128], index: 2, kind: input, shape index: {}]
  %s3 = inlined_call_operand.hbm [shape: f32[16,128], index: 3, kind: output, shape index: {}]
  %s4 = sld [smem:[#allocation0]]
  $region30: #{_lambda_.1} parent=0
    _
  %s6 = ssub.s32 1, %s4
  %s7 = scalar_select 0, %s6, %s4
  $region1: #{_lambda_.1} parent=0
    #allocation2 [shape = 'u8[32768]{0}', space=vmem, size = 0x8000, scoped, tag = 'input window, operand 1, single buffered']
    #allocation3 [shape = 's32[1]{0}', space=sflag, size = 0x4, scoped, tag = 'scoped memory for _lambda_.1']
    #allocation4 [shape = 's32[1]{0}', space=sflag, size = 0x4, scoped, tag = 'scoped memory for _lambda_.1']
    #allocation5 [shape = 'u8[32768]{0}', space=vmem, size = 0x8000, scoped, tag = 'input window, operand 2, single buffered']
    #allocation6 [shape = 's32[1]{0}', space=sflag, size = 0x4, scoped, tag = 'scoped memory for _lambda_.1']
    #allocation7 [shape = 'u8[8192]{0}', space=vmem, size = 0x2000, scoped, tag = 'output window, operand 0, single buffered']
    %8 = vsyncpa [#allocation3], 0
    %9 = vsyncpa [#allocation6], 0
    %10 = vsyncpa [#allocation4], 0
    // Predicated region
    $region2: #{_lambda_.1} parent=1 // pred_check
      _
    $region3: #{_lambda_.1} parent=1 // pred_check_branch
      %12 = sbr.rel (0) target = $region5
    $region4: #{_lambda_.1} parent=1 // pred_region
      _
    $region5: #{_lambda_.1} parent=1 // pred_fallthru
      _
    // Predicated region
    $region6: #{_lambda_.1} parent=1 // pred_check
      _
    $region7: #{_lambda_.1} parent=1 // pred_check_branch
      %14 = sbr.rel (0) target = $region9
    $region8: #{_lambda_.1} parent=1 // pred_region
      %16 = vsyncadd [#allocation3], 0
      %s17 = sshll.u32 %s1, 4
      %s18 = int_to_ptr.hbm [resolvable:$true] %s17
      %s19 = sshll.u32 [#allocation2], 4
      %s20 = int_to_ptr.vmem [resolvable:$true] %s19
      %25 = dma.hbm_to_vmem [thread:$0]  %s18, 1024, %s20, [#allocation3], 64, 64, 4
    $region9: #{_lambda_.1} parent=1 // pred_fallthru
      _
    // Predicated region
    $region10: #{_lambda_.1} parent=1 // pred_check
      _
    $region11: #{_lambda_.1} parent=1 // pred_check_branch
      %27 = sbr.rel (0) target = $region13
    $region12: #{_lambda_.1} parent=1 // pred_region
      %29 = vsyncadd [#allocation6], 0
      %s30 = sshll.u32 %s2, 4
      %s31 = int_to_ptr.hbm [resolvable:$true] %s30
      %s32 = sshll.u32 [#allocation5], 4
      %s33 = int_to_ptr.vmem [resolvable:$true] %s32
      %38 = dma.hbm_to_vmem [thread:$0]  %s31, 1024, %s33, [#allocation6], 64, 64, 4
    $region13: #{_lambda_.1} parent=1 // pred_fallthru
      _
    // Predicated region
    $region14: #{_lambda_.1} parent=1 // pred_check
      _
    $region15: #{_lambda_.1} parent=1 // pred_check_branch
      %40 = sbr.rel (0) target = $region17
    $region16: #{_lambda_.1} parent=1 // pred_region
      %42 = dma.done [#allocation3], 1024
    $region17: #{_lambda_.1} parent=1 // pred_fallthru
      _
    // Predicated region
    $region18: #{_lambda_.1} parent=1 // pred_check
      _
    $region19: #{_lambda_.1} parent=1 // pred_check_branch
      %44 = sbr.rel (0) target = $region21
    $region20: #{_lambda_.1} parent=1 // pred_region
      %46 = dma.done [#allocation6], 1024
    $region21: #{_lambda_.1} parent=1 // pred_fallthru
      _
    %v47 = vld [vmem:[%s0] sm:$0xff]
    %v48 = vld [vmem:[%s0 + $0x8] sm:$0xff]
    %v49 = vlaneseq
    %v50 = vand.u32 %v49, 127
    %51 = vset.pattern.permute.xlu0 0
    %52 = vperm.xlu0 %51, %v47
    %v53 = vpop.permute.xlu0 %52
    %54 = vset.pattern.permute.xlu0 0
    %55 = vperm.xlu0 %54, %v48
    %v56 = vpop.permute.xlu0 %55
    %vm57 = vcmp.eq.s32.totalorder %v50, %v53
    %vm58 = vcmp.eq.s32.totalorder %v50, %v56
    %59 = vset.pattern.permute.xlu0 1
    %60 = vperm.xlu0 %59, %v47
    %v61 = vpop.permute.xlu0 %60
    %62 = vset.pattern.permute.xlu0 1
    %63 = vperm.xlu0 %62, %v48
    %v64 = vpop.permute.xlu0 %63
    %vm65 = vcmp.eq.s32.totalorder %v50, %v61
    %vm66 = vcmp.eq.s32.totalorder %v50, %v64
    %vm67 = vmor %vm57, %vm65
    %vm68 = vmor %vm58, %vm66
    %v69 = vsel %vm67, 1, 0
    %v70 = vsel %vm68, 1, 0
    %v71 = vcvt.s32.f32 %v69
    %v72 = vcvt.s32.f32 %v70
    %v73 = vpack.c.bf16 %v72, %v71
    %v74 = vld [vmem:[#allocation2] sm:$0xf]
    %v75 = vld [vmem:[#allocation2 + $0x4] sm:$0xf]
    %v76 = vld [vmem:[#allocation2 + $0x8] sm:$0xf]
    %v77 = vld [vmem:[#allocation2 + $0xc] sm:$0xf]
    %v78 = vld [vmem:[#allocation2 + $0x10] sm:$0xf]
    %v79 = vld [vmem:[#allocation2 + $0x14] sm:$0xf]
    %v80 = vld [vmem:[#allocation2 + $0x18] sm:$0xf]
    %v81 = vld [vmem:[#allocation2 + $0x1c] sm:$0xf]
    %v82 = vld [vmem:[#allocation2 + $0x20] sm:$0xf]
    %v83 = vld [vmem:[#allocation2 + $0x24] sm:$0xf]
    %v84 = vld [vmem:[#allocation2 + $0x28] sm:$0xf]
    %v85 = vld [vmem:[#allocation2 + $0x2c] sm:$0xf]
    %v86 = vld [vmem:[#allocation2 + $0x30] sm:$0xf]
    %v87 = vld [vmem:[#allocation2 + $0x34] sm:$0xf]
    %v88 = vld [vmem:[#allocation2 + $0x38] sm:$0xf]
    %v89 = vld [vmem:[#allocation2 + $0x3c] sm:$0xf]
    %v106 = vunpack.c.l.b16 %v74
    %v107 = vunpack.c.l.b16 %v75
    %v108 = vunpack.c.l.b16 %v76
    %v109 = vunpack.c.l.b16 %v77
    %v110 = vunpack.c.l.b16 %v78
    %v111 = vunpack.c.l.b16 %v79
    %v112 = vunpack.c.l.b16 %v80
    %v113 = vunpack.c.l.b16 %v81
    %v114 = vunpack.c.l.b16 %v82
    %v115 = vunpack.c.l.b16 %v83
    %v116 = vunpack.c.l.b16 %v84
    %v117 = vunpack.c.l.b16 %v85
    %v118 = vunpack.c.l.b16 %v86
    %v119 = vunpack.c.l.b16 %v87
    %v120 = vunpack.c.l.b16 %v88
    %v121 = vunpack.c.l.b16 %v89
    %v122 = vpack.c.b16 %v107, %v106
    %v123 = vpack.c.b16 %v109, %v108
    %v124 = vpack.c.b16 %v111, %v110
    %v125 = vpack.c.b16 %v113, %v112
    %v126 = vpack.c.b16 %v115, %v114
    %v127 = vpack.c.b16 %v117, %v116
    %v128 = vpack.c.b16 %v119, %v118
    %v129 = vpack.c.b16 %v121, %v120
    %138 = vmatpush.bf16.msra.mxu0 %v129
    %139 = vmatpush.bf16.msra.mxu0 %v128
    %140 = vmatpush.bf16.msra.mxu0 %v127
    %141 = vmatpush.bf16.msra.mxu0 %v126
    %142 = vmatpush.bf16.msra.mxu0 %v125
    %143 = vmatpush.bf16.msra.mxu0 %v124
    %144 = vmatpush.bf16.msra.mxu0 %v123
    %145 = vmatpush.bf16.msra.mxu0 %v122
    %146 = vmatmul.bf16.gmra.mxu0 %v73
    %v147 = vpop.f32.mrf.mxu0
    %v148 = vadd.f32 0.0, %v147
    %v149 = vpop.f32.mrf.mxu0
    %v150 = vadd.f32 0.0, %v149
    %151 = vdwg.mxu0
    %v152 = vmax.f32 %v148, 0.0
    %v153 = vmax.f32 %v150, 0.0
    %v154 = vpack.c.bf16 %v153, %v152
    %v155 = vld [vmem:[#allocation5] sm:$0xf]
    %v156 = vld [vmem:[#allocation5 + $0x4] sm:$0xf]
    %v157 = vld [vmem:[#allocation5 + $0x8] sm:$0xf]
    %v158 = vld [vmem:[#allocation5 + $0xc] sm:$0xf]
    %v159 = vld [vmem:[#allocation5 + $0x10] sm:$0xf]
    %v160 = vld [vmem:[#allocation5 + $0x14] sm:$0xf]
    %v161 = vld [vmem:[#allocation5 + $0x18] sm:$0xf]
    %v162 = vld [vmem:[#allocation5 + $0x1c] sm:$0xf]
    %v163 = vld [vmem:[#allocation5 + $0x20] sm:$0xf]
    %v164 = vld [vmem:[#allocation5 + $0x24] sm:$0xf]
    %v165 = vld [vmem:[#allocation5 + $0x28] sm:$0xf]
    %v166 = vld [vmem:[#allocation5 + $0x2c] sm:$0xf]
    %v167 = vld [vmem:[#allocation5 + $0x30] sm:$0xf]
    %v168 = vld [vmem:[#allocation5 + $0x34] sm:$0xf]
    %v169 = vld [vmem:[#allocation5 + $0x38] sm:$0xf]
    %v170 = vld [vmem:[#allocation5 + $0x3c] sm:$0xf]
    %v187 = vunpack.c.l.b16 %v155
    %v188 = vunpack.c.l.b16 %v156
    %v189 = vunpack.c.l.b16 %v157
    %v190 = vunpack.c.l.b16 %v158
    %v191 = vunpack.c.l.b16 %v159
    %v192 = vunpack.c.l.b16 %v160
    %v193 = vunpack.c.l.b16 %v161
    %v194 = vunpack.c.l.b16 %v162
    %v195 = vunpack.c.l.b16 %v163
    %v196 = vunpack.c.l.b16 %v164
    %v197 = vunpack.c.l.b16 %v165
    %v198 = vunpack.c.l.b16 %v166
    %v199 = vunpack.c.l.b16 %v167
    %v200 = vunpack.c.l.b16 %v168
    %v201 = vunpack.c.l.b16 %v169
    %v202 = vunpack.c.l.b16 %v170
    %v203 = vpack.c.b16 %v188, %v187
    %v204 = vpack.c.b16 %v190, %v189
    %v205 = vpack.c.b16 %v192, %v191
    %v206 = vpack.c.b16 %v194, %v193
    %v207 = vpack.c.b16 %v196, %v195
    %v208 = vpack.c.b16 %v198, %v197
    %v209 = vpack.c.b16 %v200, %v199
    %v210 = vpack.c.b16 %v202, %v201
    %219 = vmatpush.bf16.msra.mxu0 %v210
    %220 = vmatpush.bf16.msra.mxu0 %v209
    %221 = vmatpush.bf16.msra.mxu0 %v208
    %222 = vmatpush.bf16.msra.mxu0 %v207
    %223 = vmatpush.bf16.msra.mxu0 %v206
    %224 = vmatpush.bf16.msra.mxu0 %v205
    %225 = vmatpush.bf16.msra.mxu0 %v204
    %226 = vmatpush.bf16.msra.mxu0 %v203
    %227 = vmatmul.bf16.gmra.mxu0 %v154
    %v228 = vpop.f32.mrf.mxu0
    %v229 = vadd.f32 0.0, %v228
    %v230 = vpop.f32.mrf.mxu0
    %v231 = vadd.f32 0.0, %v230
    %232 = vdwg.mxu0
    %233 = vst [vmem:[#allocation7] sm:$0xff] %v229
    %234 = vst [vmem:[#allocation7 + $0x8] sm:$0xff] %v231
    // Predicated region
    $region22: #{_lambda_.1} parent=1 // pred_check
      _
    $region23: #{_lambda_.1} parent=1 // pred_check_branch
      %236 = sbr.rel (0) target = $region25
    $region24: #{_lambda_.1} parent=1 // pred_region
      %238 = vsyncadd [#allocation4], 0
      %s239 = sshll.u32 [#allocation7], 4
      %s240 = int_to_ptr.vmem [resolvable:$true] %s239
      %s241 = sshll.u32 %s3, 4
      %s242 = int_to_ptr.hbm [resolvable:$true] %s241
      %247 = dma.vmem_to_hbm [thread:$0]  %s240, 256, %s242, [#allocation4], 128, 128, 8
    $region25: #{_lambda_.1} parent=1 // pred_fallthru
      _
    // Predicated region
    $region26: #{_lambda_.1} parent=1 // pred_check
      _
    $region27: #{_lambda_.1} parent=1 // pred_check_branch
      %249 = sbr.rel (0) target = $region29
    $region28: #{_lambda_.1} parent=1 // pred_region
      %251 = dma.done [#allocation4], 256
    $region29: #{_lambda_.1} parent=1 // pred_fallthru
      _
    %252 = vsyncpa [#allocation3], 1
    %253 = vsyncpa [#allocation6], 1
    %254 = vsyncpa [#allocation4], 1

</llo_original>
